<compile_context>
chip_gen: v6e
topology: v6e:2x2x1
jax: 0.10.0
libtpu: 0.0.40
codegen_flags: <defaults>
</compile_context>

<pallas_src>
import functools

import jax
import jax.numpy as jnp
from jax import lax
from jax.experimental import pallas as pl
from jax.experimental.pallas import tpu as pltpu


def _diffusion_kernel(dt_mat_ref, out_ref, *, n_real, squarings, quotient,
                      remainder, compute_dtype):
    """dt_mat_ref: (N_pad, N_pad) = D^T resident in VMEM (f32, zero-padded).
    out_ref: (1, N_pad) normalized spins (cols >= n_real are zero / sliced off).

    spins^T = ones_row @ (D^T)^total_steps with
      total_steps = quotient * 2^squarings + remainder
    computed as:  r matvecs with B, then s squarings B -> P = B^(2^s), then
    q matvecs with P.  The first matvec is a free column-sum (XLU reduce).
    """
    n_pad = dt_mat_ref.shape[0]
    m_f32 = dt_mat_ref[...]                       # (N_pad, N_pad) f32, = D^T
    b = m_f32.astype(compute_dtype)

    # v is an (8, N_pad) row-replicated left vector (sublane-aligned matvecs);
    # every row equals ones_row @ (D^T)^(exponent consumed so far).
    def colsum(mat_f32):
        row = jnp.sum(mat_f32, axis=0, keepdims=True)        # ones @ mat (XLU)
        return jnp.broadcast_to(row, (8, n_pad))

    v = None

    # --- low part of the exponent: r matvecs with B --------------------------
    if remainder > 0:
        v = colsum(m_f32)                                     # ones @ B
        for _ in range(remainder - 1):
            v = jnp.dot(v.astype(compute_dtype), b,
                        preferred_element_type=jnp.float32)

    # --- s squarings: P = B^(2^s) --------------------------------------------
    p = b
    for _ in range(squarings):
        p = jnp.dot(p, p, preferred_element_type=jnp.float32).astype(
            compute_dtype)

    # --- high part: q matvecs with P ------------------------------------------
    if quotient > 0:
        q_left = quotient
        if v is None:
            v = colsum(p.astype(jnp.float32))                 # ones @ P
            q_left -= 1
        for _ in range(q_left):
            v = jnp.dot(v.astype(compute_dtype), p,
                        preferred_element_type=jnp.float32)

    if v is None:                                             # total_steps == 0
        v = jnp.ones((8, n_pad), jnp.float32)

    x = v[0:1, :].astype(jnp.float32)                         # (1, N_pad)

    # NOTE: the in-loop "if total_steps % int(5/dt) == 0" branch of the torch
    # code only recomputes values that are overwritten after the loop -> no-op.

    # --- epilogue: normalize sites (1 <= col < n_real) by max |.|, pin node 0 -
    col = lax.broadcasted_iota(jnp.int32, (1, n_pad), 1)
    site_mask = jnp.logical_and(col >= 1, col < n_real)
    abs_site = jnp.where(site_mask, jnp.abs(x), 0.0)
    max_abs = jnp.max(abs_site, axis=1, keepdims=True)        # (1, 1)
    # Guard /0 -> NaN (intentional divergence from torch, which would emit NaN
    # when all sites are exactly zero).
    safe_max = jnp.where(max_abs > 0.0, max_abs, 1.0)
    inv = pl.reciprocal(safe_max, approx=True)                # EUP slot
    out_ref[...] = jnp.where(site_mask, x * inv,
                             jnp.where(col == 0, 1.0, 0.0))


def build_diffusion_matrix_t(adj_ind, pol_a_val, n, n_pad, dt):
    """Dense, zero-padded D^T built directly (scatter at [dst, src]);
    equivalent to add_self_loops + row-0 fixup + sp_from_iv + transpose without
    an extra XLA transpose pass.  Padded rows/cols stay exactly zero, so powers
    of the padded matrix agree with the unpadded ones on the real block."""
    src = adj_ind[0]
    dst = adj_ind[1]
    d_t = jnp.zeros((n_pad, n_pad), jnp.float32)
    d_t = d_t.at[dst, src].add(dt * pol_a_val.astype(jnp.float32))
    diag = jnp.arange(n)
    d_t = d_t.at[diag, diag].add(1.0 - dt)                    # self loops, 1-dt
    # D row 0 forced to e_0  <=>  D^T column 0 forced to e_0.
    d_t = d_t.at[:, 0].set(0.0)
    d_t = d_t.at[0, 0].set(1.0)
    return d_t


def _select_squaring_depth(total_steps, n_pad):
    """Pick s minimizing: s * n_pad  (each squaring ~ n_pad units of N^2 MXU
    work) + (q + r) * 64 (each dependent row-matvec ~ fixed latency/overhead).
    Deep squaring for small N (latency-bound), shallow for large N."""
    if total_steps <= 0:
        return 0, 0, 0
    best = None
    for s in range(total_steps.bit_length()):
        q, r = divmod(total_steps, 1 << s)
        cost = s * n_pad + (q + r) * 64
        if best is None or cost < best[0]:
            best = (cost, s, q, r)
    return best[1], best[2], best[3]


def diffusion_const_field(adj_ind, pol_a_val, n_1, dt=0.1, T=10,
                          compute_dtype=jnp.float32):
    total_steps = int(T / dt)
    n_pad = max(128, ((n_1 + 127) // 128) * 128)
    d_t = build_diffusion_matrix_t(adj_ind, pol_a_val, n_1, n_pad, dt)
    squarings, quotient, remainder = _select_squaring_depth(total_steps, n_pad)

    # VMEM budget: input D^T buffer + current power + squaring temp (+ row
    # vectors / output / compiler scratch).  compute_dtype=bf16 halves the
    # power buffers; we budget against the conservative f32 sizing either way.
    mat_bytes = n_pad * n_pad * 4
    needed = int(3.5 * mat_bytes) + (2 << 20)
    try:
        vmem_cap = int(0.85 * pltpu.get_tpu_info().vmem_capacity_bytes)
    except Exception:  # conservative fallback if the query is unavailable
        vmem_cap = 48 << 20
    if needed > vmem_cap:
        # TODO(synk): streaming fallback — keep only the (8, N) row vector
        # resident and BlockSpec-stream K-blocks of D^T (s=0) from HBM per
        # matvec instead of whole-matrix-resident squaring.
        raise NotImplementedError(
            f"N={n_1} (padded {n_pad}) needs ~{needed >> 20} MiB VMEM > cap "
            f"{vmem_cap >> 20} MiB; streaming path not implemented.")
    vmem_budget = min(max(needed, 16 << 20), vmem_cap)

    # TODO(synk): for small N the dense scatter that builds D^T in HBM
    # dominates end-to-end latency; build D^T in-kernel from SMEM
    # scalar-prefetched (adj_ind, pol_a_val) to remove that extra matrix pass.
    # TODO(synk): on v7x (2 TensorCores) split each squaring's output rows
    # across cores (core_map + VMEM_SHARED/CMEM exchange) for large N.

    kernel = functools.partial(
        _diffusion_kernel, n_real=n_1, squarings=squarings, quotient=quotient,
        remainder=remainder, compute_dtype=compute_dtype)
    out_row = pl.pallas_call(
        kernel,
        out_shape=jax.ShapeDtypeStruct((1, n_pad), jnp.float32),
        # grid=() single invocation; whole (padded) matrix resident once in
        # VMEM (no double-buffered BlockSpec pipeline -> half the footprint).
        in_specs=[pl.BlockSpec(memory_space=pltpu.MemorySpace.VMEM)],
        out_specs=pl.BlockSpec(memory_space=pltpu.MemorySpace.VMEM),
        compiler_params=pltpu.CompilerParams(vmem_limit_bytes=vmem_budget),
    )(d_t)
    return out_row[0, :n_1].reshape(n_1, 1)


def _reference(adj_ind, pol_a_val, n_1, dt=0.1, T=10):
    """Pure-JAX reference mirroring the PyTorch forward (100 dense matvecs)."""
    src = adj_ind[0]
    dst = adj_ind[1]
    d = jnp.zeros((n_1, n_1), jnp.float32)
    d = d.at[src, dst].add(dt * pol_a_val.astype(jnp.float32))
    d = d.at[jnp.arange(n_1), jnp.arange(n_1)].add(1.0 - dt)
    d = d.at[0, :].set(0.0)
    d = d.at[0, 0].set(1.0)
    spins = jnp.ones((n_1, 1), jnp.float32)
    for _ in range(int(T / dt)):
        spins = d @ spins
    site = spins[1:]
    normed = site / jnp.max(jnp.abs(site))
    return jnp.concatenate([jnp.ones((1, 1), jnp.float32), normed], axis=0)


if __name__ == "__main__":
    N_1 = 16  # node 0 = constant field node, nodes 1..15 = sites

    # Deterministic small graph: every site connects to the field node, plus a
    # ring over the sites (both directions). No pre-existing self loops.
    edges = []
    for i in range(1, N_1):
        edges.append((i, 0))
    for i in range(1, N_1):
        j = i + 1 if i + 1 < N_1 else 1
        edges.append((i, j))
        edges.append((j, i))
    adj_ind = jnp.array(edges, dtype=jnp.int32).T            # (2, E), E = 45
    num_edges = adj_ind.shape[1]

    key = jax.random.PRNGKey(0)
    pol_a_val = jax.random.uniform(
        key, (num_edges,), minval=0.05, maxval=0.2, dtype=jnp.float32
    )

    out = diffusion_const_field(adj_ind, pol_a_val, N_1)
    out = jax.block_until_ready(out)

    ref = _reference(adj_ind, pol_a_val, N_1)
    assert out.shape == (N_1, 1), out.shape
    assert bool(jnp.allclose(out, ref, rtol=5e-3, atol=5e-3)), (out, ref)

    print("KERNEL_OK")
</pallas_src>

<mosaic_0001>
module attributes {stable_mosaic.version = 11 : i64} {
  func.func @_diffusion_kernel(%arg0: memref<128x128xf32, #tpu.memory_space<vmem>>, %arg1: memref<1x128xf32, #tpu.memory_space<vmem>>) attributes {dimension_semantics = [], scalar_prefetch = 0 : i64, scratch_operands = 0 : i64, tpu.core_type = #tpu.core_type<tc>} {
    %c0 = arith.constant 0 : index
    %c0_0 = arith.constant 0 : index
    %0 = vector.load %arg0[%c0, %c0_0] : memref<128x128xf32, #tpu.memory_space<vmem>>, vector<128x128xf32>
    %cst = arith.constant dense<0.000000e+00> : vector<128xf32>
    %1 = vector.multi_reduction <add>, %0, %cst [0] : vector<128x128xf32> to vector<128xf32>
    %2 = vector.shape_cast %1 : vector<128xf32> to vector<1x128xf32>
    %3 = vector.shape_cast %2 : vector<1x128xf32> to vector<1x128xf32>
    %4 = vector.broadcast %3 : vector<1x128xf32> to vector<8x128xf32>
    %cst_1 = arith.constant dense<0.000000e+00> : vector<8x128xf32>
    %5 = tpu.matmul %4, %0, %cst_1 {dimension_numbers = #tpu.dot_dimension_numbers<[1], [0], [0], [1], [0, 0, 1, 1], [], []>} : vector<8x128xf32>, vector<128x128xf32>, vector<8x128xf32> -> vector<8x128xf32>
    %cst_2 = arith.constant dense<0.000000e+00> : vector<8x128xf32>
    %6 = tpu.matmul %5, %0, %cst_2 {dimension_numbers = #tpu.dot_dimension_numbers<[1], [0], [0], [1], [0, 0, 1, 1], [], []>} : vector<8x128xf32>, vector<128x128xf32>, vector<8x128xf32> -> vector<8x128xf32>
    %cst_3 = arith.constant dense<0.000000e+00> : vector<8x128xf32>
    %7 = tpu.matmul %6, %0, %cst_3 {dimension_numbers = #tpu.dot_dimension_numbers<[1], [0], [0], [1], [0, 0, 1, 1], [], []>} : vector<8x128xf32>, vector<128x128xf32>, vector<8x128xf32> -> vector<8x128xf32>
    %cst_4 = arith.constant dense<0.000000e+00> : vector<128x128xf32>
    %8 = tpu.matmul %0, %0, %cst_4 {dimension_numbers = #tpu.dot_dimension_numbers<[1], [0], [0], [1], [0, 0, 1, 1], [], []>} : vector<128x128xf32>, vector<128x128xf32>, vector<128x128xf32> -> vector<128x128xf32>
    %cst_5 = arith.constant dense<0.000000e+00> : vector<128x128xf32>
    %9 = tpu.matmul %8, %8, %cst_5 {dimension_numbers = #tpu.dot_dimension_numbers<[1], [0], [0], [1], [0, 0, 1, 1], [], []>} : vector<128x128xf32>, vector<128x128xf32>, vector<128x128xf32> -> vector<128x128xf32>
    %cst_6 = arith.constant dense<0.000000e+00> : vector<128x128xf32>
    %10 = tpu.matmul %9, %9, %cst_6 {dimension_numbers = #tpu.dot_dimension_numbers<[1], [0], [0], [1], [0, 0, 1, 1], [], []>} : vector<128x128xf32>, vector<128x128xf32>, vector<128x128xf32> -> vector<128x128xf32>
    %cst_7 = arith.constant dense<0.000000e+00> : vector<128x128xf32>
    %11 = tpu.matmul %10, %10, %cst_7 {dimension_numbers = #tpu.dot_dimension_numbers<[1], [0], [0], [1], [0, 0, 1, 1], [], []>} : vector<128x128xf32>, vector<128x128xf32>, vector<128x128xf32> -> vector<128x128xf32>
    %cst_8 = arith.constant dense<0.000000e+00> : vector<128x128xf32>
    %12 = tpu.matmul %11, %11, %cst_8 {dimension_numbers = #tpu.dot_dimension_numbers<[1], [0], [0], [1], [0, 0, 1, 1], [], []>} : vector<128x128xf32>, vector<128x128xf32>, vector<128x128xf32> -> vector<128x128xf32>
    %cst_9 = arith.constant dense<0.000000e+00> : vector<8x128xf32>
    %13 = tpu.matmul %7, %12, %cst_9 {dimension_numbers = #tpu.dot_dimension_numbers<[1], [0], [0], [1], [0, 0, 1, 1], [], []>} : vector<8x128xf32>, vector<128x128xf32>, vector<8x128xf32> -> vector<8x128xf32>
    %cst_10 = arith.constant dense<0.000000e+00> : vector<8x128xf32>
    %14 = tpu.matmul %13, %12, %cst_10 {dimension_numbers = #tpu.dot_dimension_numbers<[1], [0], [0], [1], [0, 0, 1, 1], [], []>} : vector<8x128xf32>, vector<128x128xf32>, vector<8x128xf32> -> vector<8x128xf32>
    %cst_11 = arith.constant dense<0.000000e+00> : vector<8x128xf32>
    %15 = tpu.matmul %14, %12, %cst_11 {dimension_numbers = #tpu.dot_dimension_numbers<[1], [0], [0], [1], [0, 0, 1, 1], [], []>} : vector<8x128xf32>, vector<128x128xf32>, vector<8x128xf32> -> vector<8x128xf32>
    %16 = vector.extract_strided_slice %15 {offsets = [0, 0], sizes = [1, 128], strides = [1, 1]} : vector<8x128xf32> to vector<1x128xf32>
    %17 = tpu.iota {dimensions = array<i32: 1>} : vector<1x128xi32>
    %c1_i32 = arith.constant 1 : i32
    %18 = vector.broadcast %c1_i32 : i32 to vector<1x128xi32>
    %19 = arith.cmpi sge, %17, %18 : vector<1x128xi32>
    %c16_i32 = arith.constant 16 : i32
    %20 = vector.broadcast %c16_i32 : i32 to vector<1x128xi32>
    %21 = arith.cmpi slt, %17, %20 : vector<1x128xi32>
    %22 = arith.andi %19, %21 : vector<1x128xi1>
    %23 = math.absf %16 : vector<1x128xf32>
    %cst_12 = arith.constant 0.000000e+00 : f32
    %24 = vector.broadcast %cst_12 : f32 to vector<1x128xf32>
    %25 = arith.select %22, %23, %24 : vector<1x128xi1>, vector<1x128xf32>
    %cst_13 = arith.constant dense<0xFF800000> : vector<1xf32>
    %26 = vector.multi_reduction <maximumf>, %25, %cst_13 [1] : vector<1x128xf32> to vector<1xf32>
    %27 = vector.shape_cast %26 : vector<1xf32> to vector<1x1xf32>
    %cst_14 = arith.constant 0.000000e+00 : f32
    %28 = vector.broadcast %cst_14 : f32 to vector<1x1xf32>
    %29 = arith.cmpf ogt, %27, %28 : vector<1x1xf32>
    %cst_15 = arith.constant 1.000000e+00 : f32
    %30 = vector.broadcast %cst_15 : f32 to vector<1x1xf32>
    %31 = arith.select %29, %27, %30 : vector<1x1xi1>, vector<1x1xf32>
    %32 = tpu.reciprocal %31 {approx = true} : vector<1x1xf32> -> vector<1x1xf32>
    %33 = vector.broadcast %32 : vector<1x1xf32> to vector<1x128xf32>
    %34 = arith.mulf %16, %33 : vector<1x128xf32>
    %c0_i32 = arith.constant 0 : i32
    %35 = vector.broadcast %c0_i32 : i32 to vector<1x128xi32>
    %36 = arith.cmpi eq, %17, %35 : vector<1x128xi32>
    %cst_16 = arith.constant 1.000000e+00 : f32
    %cst_17 = arith.constant 0.000000e+00 : f32
    %37 = vector.broadcast %cst_16 : f32 to vector<1x128xf32>
    %38 = vector.broadcast %cst_17 : f32 to vector<1x128xf32>
    %39 = arith.select %36, %37, %38 : vector<1x128xi1>, vector<1x128xf32>
    %40 = arith.select %22, %34, %39 : vector<1x128xi1>, vector<1x128xf32>
    %c0_18 = arith.constant 0 : index
    %c0_19 = arith.constant 0 : index
    %41 = vector.load %arg1[%c0_18, %c0_19] : memref<1x128xf32, #tpu.memory_space<vmem>>, vector<1x128xf32>
    tpu.vector_store %arg1[%c0_18, %c0_19], %40 {strides = array<i32>} : memref<1x128xf32, #tpu.memory_space<vmem>>, vector<1x128xf32>,
    return
  }
}

</mosaic_0001>

<llo_original>
// kernel: tpu_custom_call.1
$region0: #{tpu_custom_call.1}
  #allocation0 [shape = 'u32[]', space=smem, size = 0x4, offset = 0x4, fixed_abs, tag = 'smem constant byte address 0x4 - core index']
  #allocation1 [shape = 'u32[144,128]{1,0:T(1,128)}', space=vmem, size = 0x12000, scoped, tag = 'internal scratch']
  %s0 = inlined_call_operand.hbm [shape: f32[128,128], index: 0, kind: input, shape index: {}]
  %s1 = inlined_call_operand.hbm [shape: f32[1,128], index: 1, kind: output, shape index: {}]
  %s2 = sld [smem:[#allocation0]]
  $region18: #{tpu_custom_call.1} parent=0
    _
  %s4 = ssub.s32 1, %s2
  %s5 = scalar_select 0, %s4, %s2
  $region1: #{tpu_custom_call.1} parent=0
    #allocation2 [shape = 'u8[65536]{0}', space=vmem, size = 0x10000, scoped, tag = 'input window, operand 0, single buffered']
    #allocation3 [shape = 's32[1]{0}', space=sflag, size = 0x4, scoped, tag = 'scoped memory for tpu_custom_call.1']
    #allocation4 [shape = 's32[1]{0}', space=sflag, size = 0x4, scoped, tag = 'scoped memory for tpu_custom_call.1']
    #allocation5 [shape = 'u8[512]{0}', space=vmem, size = 0x400, scoped, tag = 'output window, operand 0, single buffered']
    %6 = vsyncpa [#allocation3], 0
    %7 = vsyncpa [#allocation4], 0
    // Predicated region
    $region2: #{tpu_custom_call.1} parent=1 // pred_check
      _
    $region3: #{tpu_custom_call.1} parent=1 // pred_check_branch
      %9 = sbr.rel (0) target = $region5
    $region4: #{tpu_custom_call.1} parent=1 // pred_region
      %s11 = ssub.s32 2048, 2048
      %12 = vsyncadd [#allocation3], %s11
      %s13 = sshll.u32 [#allocation2], 4
      %s14 = int_to_ptr.vmem [resolvable:$true] %s13
      %19 = dma.hbm_to_vmem [thread:$0]  %s0, 2048, %s14, [#allocation3], 128, 128, 8
    $region5: #{tpu_custom_call.1} parent=1 // pred_fallthru
      _
    // Predicated region
    $region6: #{tpu_custom_call.1} parent=1 // pred_check
      _
    $region7: #{tpu_custom_call.1} parent=1 // pred_check_branch
      %21 = sbr.rel (0) target = $region9
    $region8: #{tpu_custom_call.1} parent=1 // pred_region
      %22 = dma.done [#allocation3], 2048
    $region9: #{tpu_custom_call.1} parent=1 // pred_fallthru
      _
    %v23 = vld [vmem:[#allocation2] sm:$0xff]
    %v24 = vld [vmem:[#allocation2 + $0x8] sm:$0xff]
    %v25 = vld [vmem:[#allocation2 + $0x10] sm:$0xff]
    %v26 = vld [vmem:[#allocation2 + $0x18] sm:$0xff]
    %v27 = vld [vmem:[#allocation2 + $0x20] sm:$0xff]
    %v28 = vld [vmem:[#allocation2 + $0x28] sm:$0xff]
    %v29 = vld [vmem:[#allocation2 + $0x30] sm:$0xff]
    %v30 = vld [vmem:[#allocation2 + $0x38] sm:$0xff]
    %v31 = vld [vmem:[#allocation2 + $0x40] sm:$0xff]
    %v32 = vld [vmem:[#allocation2 + $0x48] sm:$0xff]
    %v33 = vld [vmem:[#allocation2 + $0x50] sm:$0xff]
    %v34 = vld [vmem:[#allocation2 + $0x58] sm:$0xff]
    %v35 = vld [vmem:[#allocation2 + $0x60] sm:$0xff]
    %v36 = vld [vmem:[#allocation2 + $0x68] sm:$0xff]
    %v37 = vld [vmem:[#allocation2 + $0x70] sm:$0xff]
    %v38 = vld [vmem:[#allocation2 + $0x78] sm:$0xff]
    %v39 = vadd.f32 %v23, %v24
    %v40 = vadd.f32 %v39, %v25
    %v41 = vadd.f32 %v40, %v26
    %v42 = vadd.f32 %v41, %v27
    %v43 = vadd.f32 %v42, %v28
    %v44 = vadd.f32 %v43, %v29
    %v45 = vadd.f32 %v44, %v30
    %v46 = vadd.f32 %v45, %v31
    %v47 = vadd.f32 %v46, %v32
    %v48 = vadd.f32 %v47, %v33
    %v49 = vadd.f32 %v48, %v34
    %v50 = vadd.f32 %v49, %v35
    %v51 = vadd.f32 %v50, %v36
    %v52 = vadd.f32 %v51, %v37
    %v53 = vadd.f32 %v52, %v38
    %v54 = vrot.slane %v53, 4
    %v55 = vadd.f32 %v53, %v54
    %v56 = vrot.slane %v55, 2
    %v57 = vadd.f32 %v55, %v56
    %v58 = vrot.slane %v57, 1
    %v59 = vadd.f32 %v57, %v58
    %60 = vmatprep.subr.mxu0 0.0
    %61 = vmatpush1.msra.mxu0 %v38
    %62 = vmatprep.subr.mxu0 0.0
    %63 = vmatpush1.msra.mxu0 %v37
    %64 = vmatprep.subr.mxu0 0.0
    %65 = vmatpush1.msra.mxu0 %v36
    %66 = vmatprep.subr.mxu0 0.0
    %67 = vmatpush1.msra.mxu0 %v35
    %68 = vmatprep.subr.mxu0 0.0
    %69 = vmatpush1.msra.mxu0 %v34
    %70 = vmatprep.subr.mxu0 0.0
    %71 = vmatpush1.msra.mxu0 %v33
    %72 = vmatprep.subr.mxu0 0.0
    %73 = vmatpush1.msra.mxu0 %v32
    %74 = vmatprep.subr.mxu0 0.0
    %75 = vmatpush1.msra.mxu0 %v31
    %76 = vmatprep.subr.mxu0 0.0
    %77 = vmatpush1.msra.mxu0 %v30
    %78 = vmatprep.subr.mxu0 0.0
    %79 = vmatpush1.msra.mxu0 %v29
    %80 = vmatprep.subr.mxu0 0.0
    %81 = vmatpush1.msra.mxu0 %v28
    %82 = vmatprep.subr.mxu0 0.0
    %83 = vmatpush1.msra.mxu0 %v27
    %84 = vmatprep.subr.mxu0 0.0
    %85 = vmatpush1.msra.mxu0 %v26
    %86 = vmatprep.subr.mxu0 0.0
    %87 = vmatpush1.msra.mxu0 %v25
    %88 = vmatprep.subr.mxu0 0.0
    %89 = vmatpush1.msra.mxu0 %v24
    %90 = vmatprep.subr.mxu0 0.0
    %91 = vmatpush1.msra.mxu0 %v23
    %92 = vmatprep.subr.mxu0 0.0
    %93 = vmatpush2.msra.mxu0 0.0
    %94 = vmatprep.subr.mxu0 0.0
    %95 = vmatpush2.msra.mxu0 0.0
    %96 = vmatprep.subr.mxu0 0.0
    %97 = vmatpush2.msra.mxu0 0.0
    %98 = vmatprep.subr.mxu0 0.0
    %99 = vmatpush2.msra.mxu0 0.0
    %100 = vmatprep.subr.mxu0 0.0
    %101 = vmatpush2.msra.mxu0 0.0
    %102 = vmatprep.subr.mxu0 0.0
    %103 = vmatpush2.msra.mxu0 0.0
    %104 = vmatprep.subr.mxu0 0.0
    %105 = vmatpush2.msra.mxu0 0.0
    %106 = vmatprep.subr.mxu0 0.0
    %107 = vmatpush2.msra.mxu0 0.0
    %108 = vmatprep.subr.mxu0 0.0
    %109 = vmatpush2.msra.mxu0 0.0
    %110 = vmatprep.subr.mxu0 0.0
    %111 = vmatpush2.msra.mxu0 0.0
    %112 = vmatprep.subr.mxu0 0.0
    %113 = vmatpush2.msra.mxu0 0.0
    %114 = vmatprep.subr.mxu0 0.0
    %115 = vmatpush2.msra.mxu0 0.0
    %116 = vmatprep.subr.mxu0 0.0
    %117 = vmatpush2.msra.mxu0 0.0
    %118 = vmatprep.subr.mxu0 0.0
    %119 = vmatpush2.msra.mxu0 0.0
    %120 = vmatprep.subr.mxu0 0.0
    %121 = vmatpush2.msra.mxu0 0.0
    %122 = vmatprep.subr.mxu0 0.0
    %123 = vmatpush2.msra.mxu0 0.0
    %124 = vmatprep.mubr.f32.mxu0 0.0
    %125 = vmatmul.mubr.f32.gmra.mxu0 %v59
    %v126 = vpop.f32.mrf.mxu0
    %v127 = vadd.f32 0.0, %v126
    %v128 = vpop.f32.mrf.mxu0
    %129 = vdwg.mxu0
    %130 = vmatprep.subr.mxu0 0.0
    %131 = vmatpush1.msra.mxu0 %v38
    %132 = vmatprep.subr.mxu0 0.0
    %133 = vmatpush1.msra.mxu0 %v37
    %134 = vmatprep.subr.mxu0 0.0
    %135 = vmatpush1.msra.mxu0 %v36
    %136 = vmatprep.subr.mxu0 0.0
    %137 = vmatpush1.msra.mxu0 %v35
    %138 = vmatprep.subr.mxu0 0.0
    %139 = vmatpush1.msra.mxu0 %v34
    %140 = vmatprep.subr.mxu0 0.0
    %141 = vmatpush1.msra.mxu0 %v33
    %142 = vmatprep.subr.mxu0 0.0
    %143 = vmatpush1.msra.mxu0 %v32
    %144 = vmatprep.subr.mxu0 0.0
    %145 = vmatpush1.msra.mxu0 %v31
    %146 = vmatprep.subr.mxu0 0.0
    %147 = vmatpush1.msra.mxu0 %v30
    %148 = vmatprep.subr.mxu0 0.0
    %149 = vmatpush1.msra.mxu0 %v29
    %150 = vmatprep.subr.mxu0 0.0
    %151 = vmatpush1.msra.mxu0 %v28
    %152 = vmatprep.subr.mxu0 0.0
    %153 = vmatpush1.msra.mxu0 %v27
    %154 = vmatprep.subr.mxu0 0.0
    %155 = vmatpush1.msra.mxu0 %v26
    %156 = vmatprep.subr.mxu0 0.0
    %157 = vmatpush1.msra.mxu0 %v25
    %158 = vmatprep.subr.mxu0 0.0
    %159 = vmatpush1.msra.mxu0 %v24
    %160 = vmatprep.subr.mxu0 0.0
    %161 = vmatpush1.msra.mxu0 %v23
    %162 = vmatprep.subr.mxu0 0.0
    %163 = vmatpush2.msra.mxu0 0.0
    %164 = vmatprep.subr.mxu0 0.0
    %165 = vmatpush2.msra.mxu0 0.0
    %166 = vmatprep.subr.mxu0 0.0
    %167 = vmatpush2.msra.mxu0 0.0
    %168 = vmatprep.subr.mxu0 0.0
    %169 = vmatpush2.msra.mxu0 0.0
    %170 = vmatprep.subr.mxu0 0.0
    %171 = vmatpush2.msra.mxu0 0.0
    %172 = vmatprep.subr.mxu0 0.0
    %173 = vmatpush2.msra.mxu0 0.0
    %174 = vmatprep.subr.mxu0 0.0
    %175 = vmatpush2.msra.mxu0 0.0
    %176 = vmatprep.subr.mxu0 0.0
    %177 = vmatpush2.msra.mxu0 0.0
    %178 = vmatprep.subr.mxu0 0.0
    %179 = vmatpush2.msra.mxu0 0.0
    %180 = vmatprep.subr.mxu0 0.0
    %181 = vmatpush2.msra.mxu0 0.0
    %182 = vmatprep.subr.mxu0 0.0
    %183 = vmatpush2.msra.mxu0 0.0
    %184 = vmatprep.subr.mxu0 0.0
    %185 = vmatpush2.msra.mxu0 0.0
    %186 = vmatprep.subr.mxu0 0.0
    %187 = vmatpush2.msra.mxu0 0.0
    %188 = vmatprep.subr.mxu0 0.0
    %189 = vmatpush2.msra.mxu0 0.0
    %190 = vmatprep.subr.mxu0 0.0
    %191 = vmatpush2.msra.mxu0 0.0
    %192 = vmatprep.subr.mxu0 0.0
    %193 = vmatpush2.msra.mxu0 0.0
    %194 = vmatprep.mubr.f32.mxu0 0.0
    %195 = vmatmul.mubr.f32.gmra.mxu0 %v127
    %v196 = vpop.f32.mrf.mxu0
    %v197 = vadd.f32 0.0, %v196
    %v198 = vpop.f32.mrf.mxu0
    %199 = vdwg.mxu0
    %200 = vmatprep.subr.mxu0 0.0
    %201 = vmatpush1.msra.mxu0 %v38
    %202 = vmatprep.subr.mxu0 0.0
    %203 = vmatpush1.msra.mxu0 %v37
    %204 = vmatprep.subr.mxu0 0.0
    %205 = vmatpush1.msra.mxu0 %v36
    %206 = vmatprep.subr.mxu0 0.0
    %207 = vmatpush1.msra.mxu0 %v35
    %208 = vmatprep.subr.mxu0 0.0
    %209 = vmatpush1.msra.mxu0 %v34
    %210 = vmatprep.subr.mxu0 0.0
    %211 = vmatpush1.msra.mxu0 %v33
    %212 = vmatprep.subr.mxu0 0.0
    %213 = vmatpush1.msra.mxu0 %v32
    %214 = vmatprep.subr.mxu0 0.0
    %215 = vmatpush1.msra.mxu0 %v31
    %216 = vmatprep.subr.mxu0 0.0
    %217 = vmatpush1.msra.mxu0 %v30
    %218 = vmatprep.subr.mxu0 0.0
    %219 = vmatpush1.msra.mxu0 %v29
    %220 = vmatprep.subr.mxu0 0.0
    %221 = vmatpush1.msra.mxu0 %v28
    %222 = vmatprep.subr.mxu0 0.0
    %223 = vmatpush1.msra.mxu0 %v27
    %224 = vmatprep.subr.mxu0 0.0
    %225 = vmatpush1.msra.mxu0 %v26
    %226 = vmatprep.subr.mxu0 0.0
    %227 = vmatpush1.msra.mxu0 %v25
    %228 = vmatprep.subr.mxu0 0.0
    %229 = vmatpush1.msra.mxu0 %v24
    %230 = vmatprep.subr.mxu0 0.0
    %231 = vmatpush1.msra.mxu0 %v23
    %232 = vmatprep.subr.mxu0 0.0
    %233 = vmatpush2.msra.mxu0 0.0
    %234 = vmatprep.subr.mxu0 0.0
    %235 = vmatpush2.msra.mxu0 0.0
    %236 = vmatprep.subr.mxu0 0.0
    %237 = vmatpush2.msra.mxu0 0.0
    %238 = vmatprep.subr.mxu0 0.0
    %239 = vmatpush2.msra.mxu0 0.0
    %240 = vmatprep.subr.mxu0 0.0
    %241 = vmatpush2.msra.mxu0 0.0
    %242 = vmatprep.subr.mxu0 0.0
    %243 = vmatpush2.msra.mxu0 0.0
    %244 = vmatprep.subr.mxu0 0.0
    %245 = vmatpush2.msra.mxu0 0.0
    %246 = vmatprep.subr.mxu0 0.0
    %247 = vmatpush2.msra.mxu0 0.0
    %248 = vmatprep.subr.mxu0 0.0
    %249 = vmatpush2.msra.mxu0 0.0
    %250 = vmatprep.subr.mxu0 0.0
    %251 = vmatpush2.msra.mxu0 0.0
    %252 = vmatprep.subr.mxu0 0.0
    %253 = vmatpush2.msra.mxu0 0.0
    %254 = vmatprep.subr.mxu0 0.0
    %255 = vmatpush2.msra.mxu0 0.0
    %256 = vmatprep.subr.mxu0 0.0
    %257 = vmatpush2.msra.mxu0 0.0
    %258 = vmatprep.subr.mxu0 0.0
    %259 = vmatpush2.msra.mxu0 0.0
    %260 = vmatprep.subr.mxu0 0.0
    %261 = vmatpush2.msra.mxu0 0.0
    %262 = vmatprep.subr.mxu0 0.0
    %263 = vmatpush2.msra.mxu0 0.0
    %264 = vmatprep.mubr.f32.mxu0 0.0
    %265 = vmatmul.mubr.f32.gmra.mxu0 %v197
    %v266 = vpop.f32.mrf.mxu0
    %v267 = vadd.f32 0.0, %v266
    %v268 = vpop.f32.mrf.mxu0
    %269 = vdwg.mxu0
    %270 = vmatprep.subr.mxu0 0.0
    %271 = vmatpush1.msra.mxu0 %v38
    %272 = vmatprep.subr.mxu0 0.0
    %273 = vmatpush1.msra.mxu0 %v37
    %274 = vmatprep.subr.mxu0 0.0
    %275 = vmatpush1.msra.mxu0 %v36
    %276 = vmatprep.subr.mxu0 0.0
    %277 = vmatpush1.msra.mxu0 %v35
    %278 = vmatprep.subr.mxu0 0.0
    %279 = vmatpush1.msra.mxu0 %v34
    %280 = vmatprep.subr.mxu0 0.0
    %281 = vmatpush1.msra.mxu0 %v33
    %282 = vmatprep.subr.mxu0 0.0
    %283 = vmatpush1.msra.mxu0 %v32
    %284 = vmatprep.subr.mxu0 0.0
    %285 = vmatpush1.msra.mxu0 %v31
    %286 = vmatprep.subr.mxu0 0.0
    %287 = vmatpush1.msra.mxu0 %v30
    %288 = vmatprep.subr.mxu0 0.0
    %289 = vmatpush1.msra.mxu0 %v29
    %290 = vmatprep.subr.mxu0 0.0
    %291 = vmatpush1.msra.mxu0 %v28
    %292 = vmatprep.subr.mxu0 0.0
    %293 = vmatpush1.msra.mxu0 %v27
    %294 = vmatprep.subr.mxu0 0.0
    %295 = vmatpush1.msra.mxu0 %v26
    %296 = vmatprep.subr.mxu0 0.0
    %297 = vmatpush1.msra.mxu0 %v25
    %298 = vmatprep.subr.mxu0 0.0
    %299 = vmatpush1.msra.mxu0 %v24
    %300 = vmatprep.subr.mxu0 0.0
    %301 = vmatpush1.msra.mxu0 %v23
    %302 = vmatprep.subr.mxu0 0.0
    %303 = vmatpush2.msra.mxu0 0.0
    %304 = vmatprep.subr.mxu0 0.0
    %305 = vmatpush2.msra.mxu0 0.0
    %306 = vmatprep.subr.mxu0 0.0
    %307 = vmatpush2.msra.mxu0 0.0
    %308 = vmatprep.subr.mxu0 0.0
    %309 = vmatpush2.msra.mxu0 0.0
    %310 = vmatprep.subr.mxu0 0.0
    %311 = vmatpush2.msra.mxu0 0.0
    %312 = vmatprep.subr.mxu0 0.0
    %313 = vmatpush2.msra.mxu0 0.0
    %314 = vmatprep.subr.mxu0 0.0
    %315 = vmatpush2.msra.mxu0 0.0
    %316 = vmatprep.subr.mxu0 0.0
    %317 = vmatpush2.msra.mxu0 0.0
    %318 = vmatprep.subr.mxu0 0.0
    %319 = vmatpush2.msra.mxu0 0.0
    %320 = vmatprep.subr.mxu0 0.0
    %321 = vmatpush2.msra.mxu0 0.0
    %322 = vmatprep.subr.mxu0 0.0
    %323 = vmatpush2.msra.mxu0 0.0
    %324 = vmatprep.subr.mxu0 0.0
    %325 = vmatpush2.msra.mxu0 0.0
    %326 = vmatprep.subr.mxu0 0.0
    %327 = vmatpush2.msra.mxu0 0.0
    %328 = vmatprep.subr.mxu0 0.0
    %329 = vmatpush2.msra.mxu0 0.0
    %330 = vmatprep.subr.mxu0 0.0
    %331 = vmatpush2.msra.mxu0 0.0
    %332 = vmatprep.subr.mxu0 0.0
    %333 = vmatpush2.msra.mxu0 0.0
    %334 = vmatprep.mubr.f32.mxu0 0.0
    %335 = vmatmul.mubr.f32.gmra.mxu0 %v23
    %v336 = vpop.f32.mrf.mxu0
    %v337 = vadd.f32 0.0, %v336
    %v338 = vpop.f32.mrf.mxu0
    %339 = vmatprep.mubr.f32.mxu0 0.0
    %340 = vmatmul.mubr.f32.gmra.mxu0 %v24
    %v341 = vpop.f32.mrf.mxu0
    %v342 = vadd.f32 0.0, %v341
    %v343 = vpop.f32.mrf.mxu0
    %344 = vmatprep.mubr.f32.mxu0 0.0
    %345 = vmatmul.mubr.f32.gmra.mxu0 %v25
    %v346 = vpop.f32.mrf.mxu0
    %v347 = vadd.f32 0.0, %v346
    %v348 = vpop.f32.mrf.mxu0
    %349 = vmatprep.mubr.f32.mxu0 0.0
    %350 = vmatmul.mubr.f32.gmra.mxu0 %v26
    %v351 = vpop.f32.mrf.mxu0
    %v352 = vadd.f32 0.0, %v351
    %v353 = vpop.f32.mrf.mxu0
    %354 = vmatprep.mubr.f32.mxu0 0.0
    %355 = vmatmul.mubr.f32.gmra.mxu0 %v27
    %v356 = vpop.f32.mrf.mxu0
    %v357 = vadd.f32 0.0, %v356
    %v358 = vpop.f32.mrf.mxu0
    %359 = vmatprep.mubr.f32.mxu0 0.0
    %360 = vmatmul.mubr.f32.gmra.mxu0 %v28
    %v361 = vpop.f32.mrf.mxu0
    %v362 = vadd.f32 0.0, %v361
    %v363 = vpop.f32.mrf.mxu0
    %364 = vmatprep.mubr.f32.mxu0 0.0
    %365 = vmatmul.mubr.f32.gmra.mxu0 %v29
    %v366 = vpop.f32.mrf.mxu0
    %v367 = vadd.f32 0.0, %v366
    %v368 = vpop.f32.mrf.mxu0
    %369 = vmatprep.mubr.f32.mxu0 0.0
    %370 = vmatmul.mubr.f32.gmra.mxu0 %v30
    %v371 = vpop.f32.mrf.mxu0
    %v372 = vadd.f32 0.0, %v371
    %v373 = vpop.f32.mrf.mxu0
    %374 = vmatprep.mubr.f32.mxu0 0.0
    %375 = vmatmul.mubr.f32.gmra.mxu0 %v31
    %v376 = vpop.f32.mrf.mxu0
    %v377 = vadd.f32 0.0, %v376
    %v378 = vpop.f32.mrf.mxu0
    %379 = vmatprep.mubr.f32.mxu0 0.0
    %380 = vmatmul.mubr.f32.gmra.mxu0 %v32
    %v381 = vpop.f32.mrf.mxu0
    %v382 = vadd.f32 0.0, %v381
    %v383 = vpop.f32.mrf.mxu0
    %384 = vmatprep.mubr.f32.mxu0 0.0
    %385 = vmatmul.mubr.f32.gmra.mxu0 %v33
    %v386 = vpop.f32.mrf.mxu0
    %v387 = vadd.f32 0.0, %v386
    %v388 = vpop.f32.mrf.mxu0
    %389 = vmatprep.mubr.f32.mxu0 0.0
    %390 = vmatmul.mubr.f32.gmra.mxu0 %v34
    %v391 = vpop.f32.mrf.mxu0
    %v392 = vadd.f32 0.0, %v391
    %v393 = vpop.f32.mrf.mxu0
    %394 = vmatprep.mubr.f32.mxu0 0.0
    %395 = vmatmul.mubr.f32.gmra.mxu0 %v35
    %v396 = vpop.f32.mrf.mxu0
    %v397 = vadd.f32 0.0, %v396
    %v398 = vpop.f32.mrf.mxu0
    %399 = vmatprep.mubr.f32.mxu0 0.0
    %400 = vmatmul.mubr.f32.gmra.mxu0 %v36
    %v401 = vpop.f32.mrf.mxu0
    %v402 = vadd.f32 0.0, %v401
    %v403 = vpop.f32.mrf.mxu0
    %404 = vmatprep.mubr.f32.mxu0 0.0
    %405 = vmatmul.mubr.f32.gmra.mxu0 %v37
    %v406 = vpop.f32.mrf.mxu0
    %v407 = vadd.f32 0.0, %v406
    %v408 = vpop.f32.mrf.mxu0
    %409 = vmatprep.mubr.f32.mxu0 0.0
    %410 = vmatmul.mubr.f32.gmra.mxu0 %v38
    %v411 = vpop.f32.mrf.mxu0
    %v412 = vadd.f32 0.0, %v411
    %v413 = vpop.f32.mrf.mxu0
    %414 = vdwg.mxu0
    %415 = vmatprep.subr.mxu0 0.0
    %416 = vmatpush1.msra.mxu0 %v412
    %417 = vmatprep.subr.mxu0 0.0
    %418 = vmatpush1.msra.mxu0 %v407
    %419 = vmatprep.subr.mxu0 0.0
    %420 = vmatpush1.msra.mxu0 %v402
    %421 = vmatprep.subr.mxu0 0.0
    %422 = vmatpush1.msra.mxu0 %v397
    %423 = vmatprep.subr.mxu0 0.0
    %424 = vmatpush1.msra.mxu0 %v392
    %425 = vmatprep.subr.mxu0 0.0
    %426 = vmatpush1.msra.mxu0 %v387
    %427 = vmatprep.subr.mxu0 0.0
    %428 = vmatpush1.msra.mxu0 %v382
    %429 = vmatprep.subr.mxu0 0.0
    %430 = vmatpush1.msra.mxu0 %v377
    %431 = vmatprep.subr.mxu0 0.0
    %432 = vmatpush1.msra.mxu0 %v372
    %433 = vmatprep.subr.mxu0 0.0
    %434 = vmatpush1.msra.mxu0 %v367
    %435 = vmatprep.subr.mxu0 0.0
    %436 = vmatpush1.msra.mxu0 %v362
    %437 = vmatprep.subr.mxu0 0.0
    %438 = vmatpush1.msra.mxu0 %v357
    %439 = vmatprep.subr.mxu0 0.0
    %440 = vmatpush1.msra.mxu0 %v352
    %441 = vmatprep.subr.mxu0 0.0
    %442 = vmatpush1.msra.mxu0 %v347
    %443 = vmatprep.subr.mxu0 0.0
    %444 = vmatpush1.msra.mxu0 %v342
    %445 = vmatprep.subr.mxu0 0.0
    %446 = vmatpush1.msra.mxu0 %v337
    %447 = vmatprep.subr.mxu0 0.0
    %448 = vmatpush2.msra.mxu0 0.0
    %449 = vmatprep.subr.mxu0 0.0
    %450 = vmatpush2.msra.mxu0 0.0
    %451 = vmatprep.subr.mxu0 0.0
    %452 = vmatpush2.msra.mxu0 0.0
    %453 = vmatprep.subr.mxu0 0.0
    %454 = vmatpush2.msra.mxu0 0.0
    %455 = vmatprep.subr.mxu0 0.0
    %456 = vmatpush2.msra.mxu0 0.0
    %457 = vmatprep.subr.mxu0 0.0
    %458 = vmatpush2.msra.mxu0 0.0
    %459 = vmatprep.subr.mxu0 0.0
    %460 = vmatpush2.msra.mxu0 0.0
    %461 = vmatprep.subr.mxu0 0.0
    %462 = vmatpush2.msra.mxu0 0.0
    %463 = vmatprep.subr.mxu0 0.0
    %464 = vmatpush2.msra.mxu0 0.0
    %465 = vmatprep.subr.mxu0 0.0
    %466 = vmatpush2.msra.mxu0 0.0
    %467 = vmatprep.subr.mxu0 0.0
    %468 = vmatpush2.msra.mxu0 0.0
    %469 = vmatprep.subr.mxu0 0.0
    %470 = vmatpush2.msra.mxu0 0.0
    %471 = vmatprep.subr.mxu0 0.0
    %472 = vmatpush2.msra.mxu0 0.0
    %473 = vmatprep.subr.mxu0 0.0
    %474 = vmatpush2.msra.mxu0 0.0
    %475 = vmatprep.subr.mxu0 0.0
    %476 = vmatpush2.msra.mxu0 0.0
    %477 = vmatprep.subr.mxu0 0.0
    %478 = vmatpush2.msra.mxu0 0.0
    %479 = vmatprep.mubr.f32.mxu0 0.0
    %480 = vmatmul.mubr.f32.gmra.mxu0 %v337
    %v481 = vpop.f32.mrf.mxu0
    %v482 = vadd.f32 0.0, %v481
    %v483 = vpop.f32.mrf.mxu0
    %484 = vmatprep.mubr.f32.mxu0 0.0
    %485 = vmatmul.mubr.f32.gmra.mxu0 %v342
    %v486 = vpop.f32.mrf.mxu0
    %v487 = vadd.f32 0.0, %v486
    %v488 = vpop.f32.mrf.mxu0
    %489 = vmatprep.mubr.f32.mxu0 0.0
    %490 = vmatmul.mubr.f32.gmra.mxu0 %v347
    %v491 = vpop.f32.mrf.mxu0
    %v492 = vadd.f32 0.0, %v491
    %v493 = vpop.f32.mrf.mxu0
    %494 = vmatprep.mubr.f32.mxu0 0.0
    %495 = vmatmul.mubr.f32.gmra.mxu0 %v352
    %v496 = vpop.f32.mrf.mxu0
    %v497 = vadd.f32 0.0, %v496
    %v498 = vpop.f32.mrf.mxu0
    %499 = vmatprep.mubr.f32.mxu0 0.0
    %500 = vmatmul.mubr.f32.gmra.mxu0 %v357
    %v501 = vpop.f32.mrf.mxu0
    %v502 = vadd.f32 0.0, %v501
    %v503 = vpop.f32.mrf.mxu0
    %504 = vmatprep.mubr.f32.mxu0 0.0
    %505 = vmatmul.mubr.f32.gmra.mxu0 %v362
    %v506 = vpop.f32.mrf.mxu0
    %v507 = vadd.f32 0.0, %v506
    %v508 = vpop.f32.mrf.mxu0
    %509 = vmatprep.mubr.f32.mxu0 0.0
    %510 = vmatmul.mubr.f32.gmra.mxu0 %v367
    %v511 = vpop.f32.mrf.mxu0
    %v512 = vadd.f32 0.0, %v511
    %v513 = vpop.f32.mrf.mxu0
    %514 = vmatprep.mubr.f32.mxu0 0.0
    %515 = vmatmul.mubr.f32.gmra.mxu0 %v372
    %v516 = vpop.f32.mrf.mxu0
    %v517 = vadd.f32 0.0, %v516
    %v518 = vpop.f32.mrf.mxu0
    %519 = vmatprep.mubr.f32.mxu0 0.0
    %520 = vmatmul.mubr.f32.gmra.mxu0 %v377
    %v521 = vpop.f32.mrf.mxu0
    %v522 = vadd.f32 0.0, %v521
    %v523 = vpop.f32.mrf.mxu0
    %524 = vmatprep.mubr.f32.mxu0 0.0
    %525 = vmatmul.mubr.f32.gmra.mxu0 %v382
    %v526 = vpop.f32.mrf.mxu0
    %v527 = vadd.f32 0.0, %v526
    %v528 = vpop.f32.mrf.mxu0
    %529 = vmatprep.mubr.f32.mxu0 0.0
    %530 = vmatmul.mubr.f32.gmra.mxu0 %v387
    %v531 = vpop.f32.mrf.mxu0
    %v532 = vadd.f32 0.0, %v531
    %v533 = vpop.f32.mrf.mxu0
    %534 = vmatprep.mubr.f32.mxu0 0.0
    %535 = vmatmul.mubr.f32.gmra.mxu0 %v392
    %v536 = vpop.f32.mrf.mxu0
    %v537 = vadd.f32 0.0, %v536
    %v538 = vpop.f32.mrf.mxu0
    %539 = vmatprep.mubr.f32.mxu0 0.0
    %540 = vmatmul.mubr.f32.gmra.mxu0 %v397
    %v541 = vpop.f32.mrf.mxu0
    %v542 = vadd.f32 0.0, %v541
    %v543 = vpop.f32.mrf.mxu0
    %544 = vmatprep.mubr.f32.mxu0 0.0
    %545 = vmatmul.mubr.f32.gmra.mxu0 %v402
    %v546 = vpop.f32.mrf.mxu0
    %v547 = vadd.f32 0.0, %v546
    %v548 = vpop.f32.mrf.mxu0
    %549 = vmatprep.mubr.f32.mxu0 0.0
    %550 = vmatmul.mubr.f32.gmra.mxu0 %v407
    %v551 = vpop.f32.mrf.mxu0
    %v552 = vadd.f32 0.0, %v551
    %v553 = vpop.f32.mrf.mxu0
    %554 = vmatprep.mubr.f32.mxu0 0.0
    %555 = vmatmul.mubr.f32.gmra.mxu0 %v412
    %v556 = vpop.f32.mrf.mxu0
    %v557 = vadd.f32 0.0, %v556
    %v558 = vpop.f32.mrf.mxu0
    %559 = vdwg.mxu0
    %560 = vmatprep.subr.mxu0 0.0
    %561 = vmatpush1.msra.mxu0 %v557
    %562 = vmatprep.subr.mxu0 0.0
    %563 = vmatpush1.msra.mxu0 %v552
    %564 = vmatprep.subr.mxu0 0.0
    %565 = vmatpush1.msra.mxu0 %v547
    %566 = vmatprep.subr.mxu0 0.0
    %567 = vmatpush1.msra.mxu0 %v542
    %568 = vmatprep.subr.mxu0 0.0
    %569 = vmatpush1.msra.mxu0 %v537
    %570 = vmatprep.subr.mxu0 0.0
    %571 = vmatpush1.msra.mxu0 %v532
    %572 = vmatprep.subr.mxu0 0.0
    %573 = vmatpush1.msra.mxu0 %v527
    %574 = vmatprep.subr.mxu0 0.0
    %575 = vmatpush1.msra.mxu0 %v522
    %576 = vmatprep.subr.mxu0 0.0
    %577 = vmatpush1.msra.mxu0 %v517
    %578 = vmatprep.subr.mxu0 0.0
    %579 = vmatpush1.msra.mxu0 %v512
    %580 = vmatprep.subr.mxu0 0.0
    %581 = vmatpush1.msra.mxu0 %v507
    %582 = vmatprep.subr.mxu0 0.0
    %583 = vmatpush1.msra.mxu0 %v502
    %584 = vmatprep.subr.mxu0 0.0
    %585 = vmatpush1.msra.mxu0 %v497
    %586 = vmatprep.subr.mxu0 0.0
    %587 = vmatpush1.msra.mxu0 %v492
    %588 = vmatprep.subr.mxu0 0.0
    %589 = vmatpush1.msra.mxu0 %v487
    %590 = vmatprep.subr.mxu0 0.0
    %591 = vmatpush1.msra.mxu0 %v482
    %592 = vmatprep.subr.mxu0 0.0
    %593 = vmatpush2.msra.mxu0 0.0
    %594 = vmatprep.subr.mxu0 0.0
    %595 = vmatpush2.msra.mxu0 0.0
    %596 = vmatprep.subr.mxu0 0.0
    %597 = vmatpush2.msra.mxu0 0.0
    %598 = vmatprep.subr.mxu0 0.0
    %599 = vmatpush2.msra.mxu0 0.0
    %600 = vmatprep.subr.mxu0 0.0
    %601 = vmatpush2.msra.mxu0 0.0
    %602 = vmatprep.subr.mxu0 0.0
    %603 = vmatpush2.msra.mxu0 0.0
    %604 = vmatprep.subr.mxu0 0.0
    %605 = vmatpush2.msra.mxu0 0.0
    %606 = vmatprep.subr.mxu0 0.0
    %607 = vmatpush2.msra.mxu0 0.0
    %608 = vmatprep.subr.mxu0 0.0
    %609 = vmatpush2.msra.mxu0 0.0
    %610 = vmatprep.subr.mxu0 0.0
    %611 = vmatpush2.msra.mxu0 0.0
    %612 = vmatprep.subr.mxu0 0.0
    %613 = vmatpush2.msra.mxu0 0.0
    %614 = vmatprep.subr.mxu0 0.0
    %615 = vmatpush2.msra.mxu0 0.0
    %616 = vmatprep.subr.mxu0 0.0
    %617 = vmatpush2.msra.mxu0 0.0
    %618 = vmatprep.subr.mxu0 0.0
    %619 = vmatpush2.msra.mxu0 0.0
    %620 = vmatprep.subr.mxu0 0.0
    %621 = vmatpush2.msra.mxu0 0.0
    %622 = vmatprep.subr.mxu0 0.0
    %623 = vmatpush2.msra.mxu0 0.0
    %624 = vmatprep.mubr.f32.mxu0 0.0
    %625 = vmatmul.mubr.f32.gmra.mxu0 %v482
    %v626 = vpop.f32.mrf.mxu0
    %v627 = vadd.f32 0.0, %v626
    %v628 = vpop.f32.mrf.mxu0
    %629 = vmatprep.mubr.f32.mxu0 0.0
    %630 = vmatmul.mubr.f32.gmra.mxu0 %v487
    %v631 = vpop.f32.mrf.mxu0
    %v632 = vadd.f32 0.0, %v631
    %v633 = vpop.f32.mrf.mxu0
    %634 = vmatprep.mubr.f32.mxu0 0.0
    %635 = vmatmul.mubr.f32.gmra.mxu0 %v492
    %v636 = vpop.f32.mrf.mxu0
    %v637 = vadd.f32 0.0, %v636
    %v638 = vpop.f32.mrf.mxu0
    %639 = vmatprep.mubr.f32.mxu0 0.0
    %640 = vmatmul.mubr.f32.gmra.mxu0 %v497
    %v641 = vpop.f32.mrf.mxu0
    %v642 = vadd.f32 0.0, %v641
    %v643 = vpop.f32.mrf.mxu0
    %644 = vmatprep.mubr.f32.mxu0 0.0
    %645 = vmatmul.mubr.f32.gmra.mxu0 %v502
    %v646 = vpop.f32.mrf.mxu0
    %v647 = vadd.f32 0.0, %v646
    %v648 = vpop.f32.mrf.mxu0
    %649 = vmatprep.mubr.f32.mxu0 0.0
    %650 = vmatmul.mubr.f32.gmra.mxu0 %v507
    %v651 = vpop.f32.mrf.mxu0
    %v652 = vadd.f32 0.0, %v651
    %v653 = vpop.f32.mrf.mxu0
    %654 = vmatprep.mubr.f32.mxu0 0.0
    %655 = vmatmul.mubr.f32.gmra.mxu0 %v512
    %v656 = vpop.f32.mrf.mxu0
    %v657 = vadd.f32 0.0, %v656
    %v658 = vpop.f32.mrf.mxu0
    %659 = vmatprep.mubr.f32.mxu0 0.0
    %660 = vmatmul.mubr.f32.gmra.mxu0 %v517
    %v661 = vpop.f32.mrf.mxu0
    %v662 = vadd.f32 0.0, %v661
    %v663 = vpop.f32.mrf.mxu0
    %664 = vmatprep.mubr.f32.mxu0 0.0
    %665 = vmatmul.mubr.f32.gmra.mxu0 %v522
    %v666 = vpop.f32.mrf.mxu0
    %v667 = vadd.f32 0.0, %v666
    %v668 = vpop.f32.mrf.mxu0
    %669 = vmatprep.mubr.f32.mxu0 0.0
    %670 = vmatmul.mubr.f32.gmra.mxu0 %v527
    %v671 = vpop.f32.mrf.mxu0
    %v672 = vadd.f32 0.0, %v671
    %v673 = vpop.f32.mrf.mxu0
    %674 = vmatprep.mubr.f32.mxu0 0.0
    %675 = vmatmul.mubr.f32.gmra.mxu0 %v532
    %v676 = vpop.f32.mrf.mxu0
    %v677 = vadd.f32 0.0, %v676
    %v678 = vpop.f32.mrf.mxu0
    %679 = vmatprep.mubr.f32.mxu0 0.0
    %680 = vmatmul.mubr.f32.gmra.mxu0 %v537
    %v681 = vpop.f32.mrf.mxu0
    %v682 = vadd.f32 0.0, %v681
    %v683 = vpop.f32.mrf.mxu0
    %684 = vmatprep.mubr.f32.mxu0 0.0
    %685 = vmatmul.mubr.f32.gmra.mxu0 %v542
    %v686 = vpop.f32.mrf.mxu0
    %v687 = vadd.f32 0.0, %v686
    %v688 = vpop.f32.mrf.mxu0
    %689 = vmatprep.mubr.f32.mxu0 0.0
    %690 = vmatmul.mubr.f32.gmra.mxu0 %v547
    %v691 = vpop.f32.mrf.mxu0
    %v692 = vadd.f32 0.0, %v691
    %v693 = vpop.f32.mrf.mxu0
    %694 = vmatprep.mubr.f32.mxu0 0.0
    %695 = vmatmul.mubr.f32.gmra.mxu0 %v552
    %v696 = vpop.f32.mrf.mxu0
    %v697 = vadd.f32 0.0, %v696
    %v698 = vpop.f32.mrf.mxu0
    %699 = vmatprep.mubr.f32.mxu0 0.0
    %700 = vmatmul.mubr.f32.gmra.mxu0 %v557
    %v701 = vpop.f32.mrf.mxu0
    %v702 = vadd.f32 0.0, %v701
    %v703 = vpop.f32.mrf.mxu0
    %704 = vdwg.mxu0
    %705 = vmatprep.subr.mxu0 0.0
    %706 = vmatpush1.msra.mxu0 %v702
    %707 = vmatprep.subr.mxu0 0.0
    %708 = vmatpush1.msra.mxu0 %v697
    %709 = vmatprep.subr.mxu0 0.0
    %710 = vmatpush1.msra.mxu0 %v692
    %711 = vmatprep.subr.mxu0 0.0
    %712 = vmatpush1.msra.mxu0 %v687
    %713 = vmatprep.subr.mxu0 0.0
    %714 = vmatpush1.msra.mxu0 %v682
    %715 = vmatprep.subr.mxu0 0.0
    %716 = vmatpush1.msra.mxu0 %v677
    %717 = vmatprep.subr.mxu0 0.0
    %718 = vmatpush1.msra.mxu0 %v672
    %719 = vmatprep.subr.mxu0 0.0
    %720 = vmatpush1.msra.mxu0 %v667
    %721 = vmatprep.subr.mxu0 0.0
    %722 = vmatpush1.msra.mxu0 %v662
    %723 = vmatprep.subr.mxu0 0.0
    %724 = vmatpush1.msra.mxu0 %v657
    %725 = vmatprep.subr.mxu0 0.0
    %726 = vmatpush1.msra.mxu0 %v652
    %727 = vmatprep.subr.mxu0 0.0
    %728 = vmatpush1.msra.mxu0 %v647
    %729 = vmatprep.subr.mxu0 0.0
    %730 = vmatpush1.msra.mxu0 %v642
    %731 = vmatprep.subr.mxu0 0.0
    %732 = vmatpush1.msra.mxu0 %v637
    %733 = vmatprep.subr.mxu0 0.0
    %734 = vmatpush1.msra.mxu0 %v632
    %735 = vmatprep.subr.mxu0 0.0
    %736 = vmatpush1.msra.mxu0 %v627
    %737 = vmatprep.subr.mxu0 0.0
    %738 = vmatpush2.msra.mxu0 0.0
    %739 = vmatprep.subr.mxu0 0.0
    %740 = vmatpush2.msra.mxu0 0.0
    %741 = vmatprep.subr.mxu0 0.0
    %742 = vmatpush2.msra.mxu0 0.0
    %743 = vmatprep.subr.mxu0 0.0
    %744 = vmatpush2.msra.mxu0 0.0
    %745 = vmatprep.subr.mxu0 0.0
    %746 = vmatpush2.msra.mxu0 0.0
    %747 = vmatprep.subr.mxu0 0.0
    %748 = vmatpush2.msra.mxu0 0.0
    %749 = vmatprep.subr.mxu0 0.0
    %750 = vmatpush2.msra.mxu0 0.0
    %751 = vmatprep.subr.mxu0 0.0
    %752 = vmatpush2.msra.mxu0 0.0
    %753 = vmatprep.subr.mxu0 0.0
    %754 = vmatpush2.msra.mxu0 0.0
    %755 = vmatprep.subr.mxu0 0.0
    %756 = vmatpush2.msra.mxu0 0.0
    %757 = vmatprep.subr.mxu0 0.0
    %758 = vmatpush2.msra.mxu0 0.0
    %759 = vmatprep.subr.mxu0 0.0
    %760 = vmatpush2.msra.mxu0 0.0
    %761 = vmatprep.subr.mxu0 0.0
    %762 = vmatpush2.msra.mxu0 0.0
    %763 = vmatprep.subr.mxu0 0.0
    %764 = vmatpush2.msra.mxu0 0.0
    %765 = vmatprep.subr.mxu0 0.0
    %766 = vmatpush2.msra.mxu0 0.0
    %767 = vmatprep.subr.mxu0 0.0
    %768 = vmatpush2.msra.mxu0 0.0
    %769 = vmatprep.mubr.f32.mxu0 0.0
    %770 = vmatmul.mubr.f32.gmra.mxu0 %v627
    %v771 = vpop.f32.mrf.mxu0
    %v772 = vadd.f32 0.0, %v771
    %v773 = vpop.f32.mrf.mxu0
    %774 = vmatprep.mubr.f32.mxu0 0.0
    %775 = vmatmul.mubr.f32.gmra.mxu0 %v632
    %v776 = vpop.f32.mrf.mxu0
    %v777 = vadd.f32 0.0, %v776
    %v778 = vpop.f32.mrf.mxu0
    %779 = vmatprep.mubr.f32.mxu0 0.0
    %780 = vmatmul.mubr.f32.gmra.mxu0 %v637
    %v781 = vpop.f32.mrf.mxu0
    %v782 = vadd.f32 0.0, %v781
    %v783 = vpop.f32.mrf.mxu0
    %784 = vmatprep.mubr.f32.mxu0 0.0
    %785 = vmatmul.mubr.f32.gmra.mxu0 %v642
    %v786 = vpop.f32.mrf.mxu0
    %v787 = vadd.f32 0.0, %v786
    %v788 = vpop.f32.mrf.mxu0
    %789 = vmatprep.mubr.f32.mxu0 0.0
    %790 = vmatmul.mubr.f32.gmra.mxu0 %v647
    %v791 = vpop.f32.mrf.mxu0
    %v792 = vadd.f32 0.0, %v791
    %v793 = vpop.f32.mrf.mxu0
    %794 = vmatprep.mubr.f32.mxu0 0.0
    %795 = vmatmul.mubr.f32.gmra.mxu0 %v652
    %v796 = vpop.f32.mrf.mxu0
    %v797 = vadd.f32 0.0, %v796
    %v798 = vpop.f32.mrf.mxu0
    %799 = vmatprep.mubr.f32.mxu0 0.0
    %800 = vmatmul.mubr.f32.gmra.mxu0 %v657
    %v801 = vpop.f32.mrf.mxu0
    %v802 = vadd.f32 0.0, %v801
    %v803 = vpop.f32.mrf.mxu0
    %804 = vmatprep.mubr.f32.mxu0 0.0
    %805 = vmatmul.mubr.f32.gmra.mxu0 %v662
    %v806 = vpop.f32.mrf.mxu0
    %v807 = vadd.f32 0.0, %v806
    %v808 = vpop.f32.mrf.mxu0
    %809 = vmatprep.mubr.f32.mxu0 0.0
    %810 = vmatmul.mubr.f32.gmra.mxu0 %v667
    %v811 = vpop.f32.mrf.mxu0
    %v812 = vadd.f32 0.0, %v811
    %v813 = vpop.f32.mrf.mxu0
    %814 = vmatprep.mubr.f32.mxu0 0.0
    %815 = vmatmul.mubr.f32.gmra.mxu0 %v672
    %v816 = vpop.f32.mrf.mxu0
    %v817 = vadd.f32 0.0, %v816
    %v818 = vpop.f32.mrf.mxu0
    %819 = vmatprep.mubr.f32.mxu0 0.0
    %820 = vmatmul.mubr.f32.gmra.mxu0 %v677
    %v821 = vpop.f32.mrf.mxu0
    %v822 = vadd.f32 0.0, %v821
    %v823 = vpop.f32.mrf.mxu0
    %824 = vmatprep.mubr.f32.mxu0 0.0
    %825 = vmatmul.mubr.f32.gmra.mxu0 %v682
    %v826 = vpop.f32.mrf.mxu0
    %v827 = vadd.f32 0.0, %v826
    %v828 = vpop.f32.mrf.mxu0
    %829 = vmatprep.mubr.f32.mxu0 0.0
    %830 = vmatmul.mubr.f32.gmra.mxu0 %v687
    %v831 = vpop.f32.mrf.mxu0
    %v832 = vadd.f32 0.0, %v831
    %v833 = vpop.f32.mrf.mxu0
    %834 = vmatprep.mubr.f32.mxu0 0.0
    %835 = vmatmul.mubr.f32.gmra.mxu0 %v692
    %v836 = vpop.f32.mrf.mxu0
    %v837 = vadd.f32 0.0, %v836
    %v838 = vpop.f32.mrf.mxu0
    %839 = vmatprep.mubr.f32.mxu0 0.0
    %840 = vmatmul.mubr.f32.gmra.mxu0 %v697
    %v841 = vpop.f32.mrf.mxu0
    %v842 = vadd.f32 0.0, %v841
    %v843 = vpop.f32.mrf.mxu0
    %844 = vmatprep.mubr.f32.mxu0 0.0
    %845 = vmatmul.mubr.f32.gmra.mxu0 %v702
    %v846 = vpop.f32.mrf.mxu0
    %v847 = vadd.f32 0.0, %v846
    %v848 = vpop.f32.mrf.mxu0
    %849 = vdwg.mxu0
    %850 = vmatprep.subr.mxu0 0.0
    %851 = vmatpush1.msra.mxu0 %v847
    %852 = vmatprep.subr.mxu0 0.0
    %853 = vmatpush1.msra.mxu0 %v842
    %854 = vmatprep.subr.mxu0 0.0
    %855 = vmatpush1.msra.mxu0 %v837
    %856 = vmatprep.subr.mxu0 0.0
    %857 = vmatpush1.msra.mxu0 %v832
    %858 = vmatprep.subr.mxu0 0.0
    %859 = vmatpush1.msra.mxu0 %v827
    %860 = vmatprep.subr.mxu0 0.0
    %861 = vmatpush1.msra.mxu0 %v822
    %862 = vmatprep.subr.mxu0 0.0
    %863 = vmatpush1.msra.mxu0 %v817
    %864 = vmatprep.subr.mxu0 0.0
    %865 = vmatpush1.msra.mxu0 %v812
    %866 = vmatprep.subr.mxu0 0.0
    %867 = vmatpush1.msra.mxu0 %v807
    %868 = vmatprep.subr.mxu0 0.0
    %869 = vmatpush1.msra.mxu0 %v802
    %870 = vmatprep.subr.mxu0 0.0
    %871 = vmatpush1.msra.mxu0 %v797
    %872 = vmatprep.subr.mxu0 0.0
    %873 = vmatpush1.msra.mxu0 %v792
    %874 = vmatprep.subr.mxu0 0.0
    %875 = vmatpush1.msra.mxu0 %v787
    %876 = vmatprep.subr.mxu0 0.0
    %877 = vmatpush1.msra.mxu0 %v782
    %878 = vmatprep.subr.mxu0 0.0
    %879 = vmatpush1.msra.mxu0 %v777
    %880 = vmatprep.subr.mxu0 0.0
    %881 = vmatpush1.msra.mxu0 %v772
    %882 = vmatprep.subr.mxu0 0.0
    %883 = vmatpush2.msra.mxu0 0.0
    %884 = vmatprep.subr.mxu0 0.0
    %885 = vmatpush2.msra.mxu0 0.0
    %886 = vmatprep.subr.mxu0 0.0
    %887 = vmatpush2.msra.mxu0 0.0
    %888 = vmatprep.subr.mxu0 0.0
    %889 = vmatpush2.msra.mxu0 0.0
    %890 = vmatprep.subr.mxu0 0.0
    %891 = vmatpush2.msra.mxu0 0.0
    %892 = vmatprep.subr.mxu0 0.0
    %893 = vmatpush2.msra.mxu0 0.0
    %894 = vmatprep.subr.mxu0 0.0
    %895 = vmatpush2.msra.mxu0 0.0
    %896 = vmatprep.subr.mxu0 0.0
    %897 = vmatpush2.msra.mxu0 0.0
    %898 = vmatprep.subr.mxu0 0.0
    %899 = vmatpush2.msra.mxu0 0.0
    %900 = vmatprep.subr.mxu0 0.0
    %901 = vmatpush2.msra.mxu0 0.0
    %902 = vmatprep.subr.mxu0 0.0
    %903 = vmatpush2.msra.mxu0 0.0
    %904 = vmatprep.subr.mxu0 0.0
    %905 = vmatpush2.msra.mxu0 0.0
    %906 = vmatprep.subr.mxu0 0.0
    %907 = vmatpush2.msra.mxu0 0.0
    %908 = vmatprep.subr.mxu0 0.0
    %909 = vmatpush2.msra.mxu0 0.0
    %910 = vmatprep.subr.mxu0 0.0
    %911 = vmatpush2.msra.mxu0 0.0
    %912 = vmatprep.subr.mxu0 0.0
    %913 = vmatpush2.msra.mxu0 0.0
    %914 = vmatprep.mubr.f32.mxu0 0.0
    %915 = vmatmul.mubr.f32.gmra.mxu0 %v772
    %v916 = vpop.f32.mrf.mxu0
    %v917 = vadd.f32 0.0, %v916
    %v918 = vpop.f32.mrf.mxu0
    %919 = vmatprep.mubr.f32.mxu0 0.0
    %920 = vmatmul.mubr.f32.gmra.mxu0 %v777
    %v921 = vpop.f32.mrf.mxu0
    %v922 = vadd.f32 0.0, %v921
    %v923 = vpop.f32.mrf.mxu0
    %924 = vmatprep.mubr.f32.mxu0 0.0
    %925 = vmatmul.mubr.f32.gmra.mxu0 %v782
    %v926 = vpop.f32.mrf.mxu0
    %v927 = vadd.f32 0.0, %v926
    %v928 = vpop.f32.mrf.mxu0
    %929 = vmatprep.mubr.f32.mxu0 0.0
    %930 = vmatmul.mubr.f32.gmra.mxu0 %v787
    %v931 = vpop.f32.mrf.mxu0
    %v932 = vadd.f32 0.0, %v931
    %v933 = vpop.f32.mrf.mxu0
    %934 = vmatprep.mubr.f32.mxu0 0.0
    %935 = vmatmul.mubr.f32.gmra.mxu0 %v792
    %v936 = vpop.f32.mrf.mxu0
    %v937 = vadd.f32 0.0, %v936
    %v938 = vpop.f32.mrf.mxu0
    %939 = vmatprep.mubr.f32.mxu0 0.0
    %940 = vmatmul.mubr.f32.gmra.mxu0 %v797
    %v941 = vpop.f32.mrf.mxu0
    %v942 = vadd.f32 0.0, %v941
    %v943 = vpop.f32.mrf.mxu0
    %944 = vmatprep.mubr.f32.mxu0 0.0
    %945 = vmatmul.mubr.f32.gmra.mxu0 %v802
    %v946 = vpop.f32.mrf.mxu0
    %v947 = vadd.f32 0.0, %v946
    %v948 = vpop.f32.mrf.mxu0
    %949 = vmatprep.mubr.f32.mxu0 0.0
    %950 = vmatmul.mubr.f32.gmra.mxu0 %v807
    %v951 = vpop.f32.mrf.mxu0
    %v952 = vadd.f32 0.0, %v951
    %v953 = vpop.f32.mrf.mxu0
    %954 = vmatprep.mubr.f32.mxu0 0.0
    %955 = vmatmul.mubr.f32.gmra.mxu0 %v812
    %v956 = vpop.f32.mrf.mxu0
    %v957 = vadd.f32 0.0, %v956
    %v958 = vpop.f32.mrf.mxu0
    %959 = vmatprep.mubr.f32.mxu0 0.0
    %960 = vmatmul.mubr.f32.gmra.mxu0 %v817
    %v961 = vpop.f32.mrf.mxu0
    %v962 = vadd.f32 0.0, %v961
    %v963 = vpop.f32.mrf.mxu0
    %964 = vmatprep.mubr.f32.mxu0 0.0
    %965 = vmatmul.mubr.f32.gmra.mxu0 %v822
    %v966 = vpop.f32.mrf.mxu0
    %v967 = vadd.f32 0.0, %v966
    %v968 = vpop.f32.mrf.mxu0
    %969 = vmatprep.mubr.f32.mxu0 0.0
    %970 = vmatmul.mubr.f32.gmra.mxu0 %v827
    %v971 = vpop.f32.mrf.mxu0
    %v972 = vadd.f32 0.0, %v971
    %v973 = vpop.f32.mrf.mxu0
    %974 = vmatprep.mubr.f32.mxu0 0.0
    %975 = vmatmul.mubr.f32.gmra.mxu0 %v832
    %v976 = vpop.f32.mrf.mxu0
    %v977 = vadd.f32 0.0, %v976
    %v978 = vpop.f32.mrf.mxu0
    %979 = vmatprep.mubr.f32.mxu0 0.0
    %980 = vmatmul.mubr.f32.gmra.mxu0 %v837
    %v981 = vpop.f32.mrf.mxu0
    %v982 = vadd.f32 0.0, %v981
    %v983 = vpop.f32.mrf.mxu0
    %984 = vmatprep.mubr.f32.mxu0 0.0
    %985 = vmatmul.mubr.f32.gmra.mxu0 %v842
    %v986 = vpop.f32.mrf.mxu0
    %v987 = vadd.f32 0.0, %v986
    %v988 = vpop.f32.mrf.mxu0
    %989 = vmatprep.mubr.f32.mxu0 0.0
    %990 = vmatmul.mubr.f32.gmra.mxu0 %v847
    %v991 = vpop.f32.mrf.mxu0
    %v992 = vadd.f32 0.0, %v991
    %v993 = vpop.f32.mrf.mxu0
    %994 = vdwg.mxu0
    %995 = vmatprep.subr.mxu0 0.0
    %996 = vmatpush1.msra.mxu0 %v992
    %997 = vmatprep.subr.mxu0 0.0
    %998 = vmatpush1.msra.mxu0 %v987
    %999 = vmatprep.subr.mxu0 0.0
    %1000 = vmatpush1.msra.mxu0 %v982
    %1001 = vmatprep.subr.mxu0 0.0
    %1002 = vmatpush1.msra.mxu0 %v977
    %1003 = vmatprep.subr.mxu0 0.0
    %1004 = vmatpush1.msra.mxu0 %v972
    %1005 = vmatprep.subr.mxu0 0.0
    %1006 = vmatpush1.msra.mxu0 %v967
    %1007 = vmatprep.subr.mxu0 0.0
    %1008 = vmatpush1.msra.mxu0 %v962
    %1009 = vmatprep.subr.mxu0 0.0
    %1010 = vmatpush1.msra.mxu0 %v957
    %1011 = vmatprep.subr.mxu0 0.0
    %1012 = vmatpush1.msra.mxu0 %v952
    %1013 = vmatprep.subr.mxu0 0.0
    %1014 = vmatpush1.msra.mxu0 %v947
    %1015 = vmatprep.subr.mxu0 0.0
    %1016 = vmatpush1.msra.mxu0 %v942
    %1017 = vmatprep.subr.mxu0 0.0
    %1018 = vmatpush1.msra.mxu0 %v937
    %1019 = vmatprep.subr.mxu0 0.0
    %1020 = vmatpush1.msra.mxu0 %v932
    %1021 = vmatprep.subr.mxu0 0.0
    %1022 = vmatpush1.msra.mxu0 %v927
    %1023 = vmatprep.subr.mxu0 0.0
    %1024 = vmatpush1.msra.mxu0 %v922
    %1025 = vmatprep.subr.mxu0 0.0
    %1026 = vmatpush1.msra.mxu0 %v917
    %1027 = vmatprep.subr.mxu0 0.0
    %1028 = vmatpush2.msra.mxu0 0.0
    %1029 = vmatprep.subr.mxu0 0.0
    %1030 = vmatpush2.msra.mxu0 0.0
    %1031 = vmatprep.subr.mxu0 0.0
    %1032 = vmatpush2.msra.mxu0 0.0
    %1033 = vmatprep.subr.mxu0 0.0
    %1034 = vmatpush2.msra.mxu0 0.0
    %1035 = vmatprep.subr.mxu0 0.0
    %1036 = vmatpush2.msra.mxu0 0.0
    %1037 = vmatprep.subr.mxu0 0.0
    %1038 = vmatpush2.msra.mxu0 0.0
    %1039 = vmatprep.subr.mxu0 0.0
    %1040 = vmatpush2.msra.mxu0 0.0
    %1041 = vmatprep.subr.mxu0 0.0
    %1042 = vmatpush2.msra.mxu0 0.0
    %1043 = vmatprep.subr.mxu0 0.0
    %1044 = vmatpush2.msra.mxu0 0.0
    %1045 = vmatprep.subr.mxu0 0.0
    %1046 = vmatpush2.msra.mxu0 0.0
    %1047 = vmatprep.subr.mxu0 0.0
    %1048 = vmatpush2.msra.mxu0 0.0
    %1049 = vmatprep.subr.mxu0 0.0
    %1050 = vmatpush2.msra.mxu0 0.0
    %1051 = vmatprep.subr.mxu0 0.0
    %1052 = vmatpush2.msra.mxu0 0.0
    %1053 = vmatprep.subr.mxu0 0.0
    %1054 = vmatpush2.msra.mxu0 0.0
    %1055 = vmatprep.subr.mxu0 0.0
    %1056 = vmatpush2.msra.mxu0 0.0
    %1057 = vmatprep.subr.mxu0 0.0
    %1058 = vmatpush2.msra.mxu0 0.0
    %1059 = vmatprep.mubr.f32.mxu0 0.0
    %1060 = vmatmul.mubr.f32.gmra.mxu0 %v267
    %v1061 = vpop.f32.mrf.mxu0
    %v1062 = vadd.f32 0.0, %v1061
    %v1063 = vpop.f32.mrf.mxu0
    %1064 = vdwg.mxu0
    %1065 = vmatprep.subr.mxu0 0.0
    %1066 = vmatpush1.msra.mxu0 %v992
    %1067 = vmatprep.subr.mxu0 0.0
    %1068 = vmatpush1.msra.mxu0 %v987
    %1069 = vmatprep.subr.mxu0 0.0
    %1070 = vmatpush1.msra.mxu0 %v982
    %1071 = vmatprep.subr.mxu0 0.0
    %1072 = vmatpush1.msra.mxu0 %v977
    %1073 = vmatprep.subr.mxu0 0.0
    %1074 = vmatpush1.msra.mxu0 %v972
    %1075 = vmatprep.subr.mxu0 0.0
    %1076 = vmatpush1.msra.mxu0 %v967
    %1077 = vmatprep.subr.mxu0 0.0
    %1078 = vmatpush1.msra.mxu0 %v962
    %1079 = vmatprep.subr.mxu0 0.0
    %1080 = vmatpush1.msra.mxu0 %v957
    %1081 = vmatprep.subr.mxu0 0.0
    %1082 = vmatpush1.msra.mxu0 %v952
    %1083 = vmatprep.subr.mxu0 0.0
    %1084 = vmatpush1.msra.mxu0 %v947
    %1085 = vmatprep.subr.mxu0 0.0
    %1086 = vmatpush1.msra.mxu0 %v942
    %1087 = vmatprep.subr.mxu0 0.0
    %1088 = vmatpush1.msra.mxu0 %v937
    %1089 = vmatprep.subr.mxu0 0.0
    %1090 = vmatpush1.msra.mxu0 %v932
    %1091 = vmatprep.subr.mxu0 0.0
    %1092 = vmatpush1.msra.mxu0 %v927
    %1093 = vmatprep.subr.mxu0 0.0
    %1094 = vmatpush1.msra.mxu0 %v922
    %1095 = vmatprep.subr.mxu0 0.0
    %1096 = vmatpush1.msra.mxu0 %v917
    %1097 = vmatprep.subr.mxu0 0.0
    %1098 = vmatpush2.msra.mxu0 0.0
    %1099 = vmatprep.subr.mxu0 0.0
    %1100 = vmatpush2.msra.mxu0 0.0
    %1101 = vmatprep.subr.mxu0 0.0
    %1102 = vmatpush2.msra.mxu0 0.0
    %1103 = vmatprep.subr.mxu0 0.0
    %1104 = vmatpush2.msra.mxu0 0.0
    %1105 = vmatprep.subr.mxu0 0.0
    %1106 = vmatpush2.msra.mxu0 0.0
    %1107 = vmatprep.subr.mxu0 0.0
    %1108 = vmatpush2.msra.mxu0 0.0
    %1109 = vmatprep.subr.mxu0 0.0
    %1110 = vmatpush2.msra.mxu0 0.0
    %1111 = vmatprep.subr.mxu0 0.0
    %1112 = vmatpush2.msra.mxu0 0.0
    %1113 = vmatprep.subr.mxu0 0.0
    %1114 = vmatpush2.msra.mxu0 0.0
    %1115 = vmatprep.subr.mxu0 0.0
    %1116 = vmatpush2.msra.mxu0 0.0
    %1117 = vmatprep.subr.mxu0 0.0
    %1118 = vmatpush2.msra.mxu0 0.0
    %1119 = vmatprep.subr.mxu0 0.0
    %1120 = vmatpush2.msra.mxu0 0.0
    %1121 = vmatprep.subr.mxu0 0.0
    %1122 = vmatpush2.msra.mxu0 0.0
    %1123 = vmatprep.subr.mxu0 0.0
    %1124 = vmatpush2.msra.mxu0 0.0
    %1125 = vmatprep.subr.mxu0 0.0
    %1126 = vmatpush2.msra.mxu0 0.0
    %1127 = vmatprep.subr.mxu0 0.0
    %1128 = vmatpush2.msra.mxu0 0.0
    %1129 = vmatprep.mubr.f32.mxu0 0.0
    %1130 = vmatmul.mubr.f32.gmra.mxu0 %v1062
    %v1131 = vpop.f32.mrf.mxu0
    %v1132 = vadd.f32 0.0, %v1131
    %v1133 = vpop.f32.mrf.mxu0
    %1134 = vdwg.mxu0
    %1135 = vmatprep.subr.mxu0 0.0
    %1136 = vmatpush1.msra.mxu0 %v992
    %1137 = vmatprep.subr.mxu0 0.0
    %1138 = vmatpush1.msra.mxu0 %v987
    %1139 = vmatprep.subr.mxu0 0.0
    %1140 = vmatpush1.msra.mxu0 %v982
    %1141 = vmatprep.subr.mxu0 0.0
    %1142 = vmatpush1.msra.mxu0 %v977
    %1143 = vmatprep.subr.mxu0 0.0
    %1144 = vmatpush1.msra.mxu0 %v972
    %1145 = vmatprep.subr.mxu0 0.0
    %1146 = vmatpush1.msra.mxu0 %v967
    %1147 = vmatprep.subr.mxu0 0.0
    %1148 = vmatpush1.msra.mxu0 %v962
    %1149 = vmatprep.subr.mxu0 0.0
    %1150 = vmatpush1.msra.mxu0 %v957
    %1151 = vmatprep.subr.mxu0 0.0
    %1152 = vmatpush1.msra.mxu0 %v952
    %1153 = vmatprep.subr.mxu0 0.0
    %1154 = vmatpush1.msra.mxu0 %v947
    %1155 = vmatprep.subr.mxu0 0.0
    %1156 = vmatpush1.msra.mxu0 %v942
    %1157 = vmatprep.subr.mxu0 0.0
    %1158 = vmatpush1.msra.mxu0 %v937
    %1159 = vmatprep.subr.mxu0 0.0
    %1160 = vmatpush1.msra.mxu0 %v932
    %1161 = vmatprep.subr.mxu0 0.0
    %1162 = vmatpush1.msra.mxu0 %v927
    %1163 = vmatprep.subr.mxu0 0.0
    %1164 = vmatpush1.msra.mxu0 %v922
    %1165 = vmatprep.subr.mxu0 0.0
    %1166 = vmatpush1.msra.mxu0 %v917
    %1167 = vmatprep.subr.mxu0 0.0
    %1168 = vmatpush2.msra.mxu0 0.0
    %1169 = vmatprep.subr.mxu0 0.0
    %1170 = vmatpush2.msra.mxu0 0.0
    %1171 = vmatprep.subr.mxu0 0.0
    %1172 = vmatpush2.msra.mxu0 0.0
    %1173 = vmatprep.subr.mxu0 0.0
    %1174 = vmatpush2.msra.mxu0 0.0
    %1175 = vmatprep.subr.mxu0 0.0
    %1176 = vmatpush2.msra.mxu0 0.0
    %1177 = vmatprep.subr.mxu0 0.0
    %1178 = vmatpush2.msra.mxu0 0.0
    %1179 = vmatprep.subr.mxu0 0.0
    %1180 = vmatpush2.msra.mxu0 0.0
    %1181 = vmatprep.subr.mxu0 0.0
    %1182 = vmatpush2.msra.mxu0 0.0
    %1183 = vmatprep.subr.mxu0 0.0
    %1184 = vmatpush2.msra.mxu0 0.0
    %1185 = vmatprep.subr.mxu0 0.0
    %1186 = vmatpush2.msra.mxu0 0.0
    %1187 = vmatprep.subr.mxu0 0.0
    %1188 = vmatpush2.msra.mxu0 0.0
    %1189 = vmatprep.subr.mxu0 0.0
    %1190 = vmatpush2.msra.mxu0 0.0
    %1191 = vmatprep.subr.mxu0 0.0
    %1192 = vmatpush2.msra.mxu0 0.0
    %1193 = vmatprep.subr.mxu0 0.0
    %1194 = vmatpush2.msra.mxu0 0.0
    %1195 = vmatprep.subr.mxu0 0.0
    %1196 = vmatpush2.msra.mxu0 0.0
    %1197 = vmatprep.subr.mxu0 0.0
    %1198 = vmatpush2.msra.mxu0 0.0
    %1199 = vmatprep.mubr.f32.mxu0 0.0
    %1200 = vmatmul.mubr.f32.gmra.mxu0 %v1132
    %v1201 = vpop.f32.mrf.mxu0
    %v1202 = vadd.f32 0.0, %v1201
    %v1203 = vpop.f32.mrf.mxu0
    %1204 = vdwg.mxu0
    %v1205 = vlaneseq
    %v1206 = vand.u32 %v1205, 127
    %vm1207 = vcmp.ge.s32.totalorder %v1206, 1
    %vm1208 = vcmp.lt.s32.totalorder %v1206, 16
    %vm1209 = vmand %vm1207, %vm1208
    %v1210 = vand.u32 2147483647, %v1202
    %v1211 = vsel %vm1209, %v1210, 0.0
    %vm1212 = vcmask 1040384
    %v1213 = vsel %vm1212, %v1211, -inf
    %1214 = vmax.xlane.f32.xlu0 %v1213
    %v1215 = vpop.xlane.xlu0 %1214
    %vm1216 = vcmp.gt.f32.partialorder %v1215, 0.0
    %v1217 = vsel %vm1216, %v1215, 1.0
    %v1218 = vrcp.pop %v1217
    %v1219 = vmul.f32 %v1202, %v1218
    %vm1220 = vcmp.eq.s32.totalorder %v1206, 0
    %v1221 = vsel %vm1220, 1.0, 0.0
    %v1222 = vsel %vm1209, %v1219, %v1221
    %1223 = vst [vmem:[#allocation5] sm:$0x1] %v1222
    // Predicated region
    $region10: #{tpu_custom_call.1} parent=1 // pred_check
      _
    $region11: #{tpu_custom_call.1} parent=1 // pred_check_branch
      %1225 = sbr.rel (0) target = $region13
    $region12: #{tpu_custom_call.1} parent=1 // pred_region
      %s1227 = ssub.s32 16, 16
      %1228 = vsyncadd [#allocation4], %s1227
      %s1230 = sshll.u32 [#allocation5], 4
      %s1231 = int_to_ptr.vmem [resolvable:$true] %s1230
      %1233 = dma.vmem_to_hbm [thread:$0]  %s1231, 16, %s1, [#allocation4]
    $region13: #{tpu_custom_call.1} parent=1 // pred_fallthru
      _
    // Predicated region
    $region14: #{tpu_custom_call.1} parent=1 // pred_check
      _
    $region15: #{tpu_custom_call.1} parent=1 // pred_check_branch
      %1235 = sbr.rel (0) target = $region17
    $region16: #{tpu_custom_call.1} parent=1 // pred_region
      %1236 = dma.done [#allocation4], 16
    $region17: #{tpu_custom_call.1} parent=1 // pred_fallthru
      _
    %1237 = vsyncpa [#allocation3], 1
    %1238 = vsyncpa [#allocation4], 1

</llo_original>
